<compile_context>
chip_gen: v6e
topology: v6e:2x2x1
jax: 0.10.0
libtpu: 0.0.40
codegen_flags: <defaults>
</compile_context>

<pallas_src>
import string

import numpy as np
import jax
import jax.numpy as jnp
from jax.experimental import pallas as pl
from jax.experimental.pallas import tpu as pltpu


# ----------------------------- vocab (pure python glue) -----------------------------
class SimpleVocab(object):
    def __init__(self):
        super(SimpleVocab, self).__init__()
        self.word2id = {}
        self.wordcount = {}
        self.word2id['<UNK>'] = 0
        self.wordcount['<UNK>'] = 9e9

    def tokenize_text(self, text):
        text = text.encode('ascii', 'ignore').decode('ascii')
        text = str(text).lower()
        tokens = text.translate(str.maketrans('', '', string.punctuation)).strip().split()
        return tokens

    def add_text_to_vocab(self, text):
        tokens = self.tokenize_text(text)
        for token in tokens:
            if token not in self.word2id:
                self.word2id[token] = len(self.word2id)
                self.wordcount[token] = 0
            self.wordcount[token] += 1

    def encode_text(self, text):
        tokens = self.tokenize_text(text)
        return [self.word2id.get(t, 0) for t in tokens]

    def get_size(self):
        return len(self.word2id)


# ----------------------------- pallas kernel -----------------------------
def _make_gather_tile_kernel(tokens_per_tile):
    T = tokens_per_tile

    def kernel(ids_ref, table_ref, out_ref):
        # ids_ref  : SMEM (n_pad,) int32  (scalar prefetch)
        # table_ref: VMEM (V, D)          (same block every step -> resident)
        # out_ref  : VMEM (T, D)          (one lane-dense slab per grid step)
        base = pl.program_id(0) * T

        @pl.loop(0, T)
        def _(t):
            tok = ids_ref[base + t]
            out_ref[pl.ds(t, 1), :] = table_ref[pl.ds(tok, 1), :]

    return kernel


def embedding_gather(table, flat_ids, tokens_per_tile=128):
    """Gather rows of `table` (V, D) at `flat_ids` (N,) -> (N, D)."""
    n = int(flat_ids.shape[0])
    v, d = int(table.shape[0]), int(table.shape[1])
    T = int(tokens_per_tile)
    num_tiles = pl.cdiv(n, T)
    n_pad = num_tiles * T

    ids_padded = jnp.zeros((n_pad,), dtype=jnp.int32)
    ids_padded = ids_padded.at[:n].set(flat_ids.astype(jnp.int32))

    itemsize = jnp.dtype(table.dtype).itemsize
    table_bytes = v * d * itemsize
    # resident table + double-buffered (T, D) output + headroom
    needed = table_bytes + 2 * T * d * itemsize + (1 << 20)
    vmem_limit = int(min(max(needed, 16 * 1024 * 1024), 48 * 1024 * 1024))
    # TODO(synk): for vocabularies too large to keep VMEM-resident, switch the
    # table to memory_space=pl.ANY and issue per-row async copies from HBM.

    grid_spec = pltpu.PrefetchScalarGridSpec(
        num_scalar_prefetch=1,
        grid=(num_tiles,),
        in_specs=[
            # Whole table as one block with a constant index_map: DMA'd once,
            # stays VMEM-resident for every grid step.
            pl.BlockSpec((v, d), lambda i, ids: (0, 0)),
        ],
        out_specs=pl.BlockSpec((T, d), lambda i, ids: (i, 0)),
    )

    out = pl.pallas_call(
        _make_gather_tile_kernel(T),
        out_shape=jax.ShapeDtypeStruct((n_pad, d), table.dtype),
        grid_spec=grid_spec,
        compiler_params=pltpu.CompilerParams(
            dimension_semantics=("parallel",),
            vmem_limit_bytes=vmem_limit,
        ),
    )(ids_padded, table)
    return out[:n]


# ----------------------------- model wrapper -----------------------------
class EmbeddingModelPallas:
    def __init__(self, texts_to_build_vocab, word_embed_dim=512, seed=0):
        self.vocab = SimpleVocab()
        for text in texts_to_build_vocab:
            self.vocab.add_text_to_vocab(text)
        vocab_size = self.vocab.get_size()
        self.word_embed_dim = word_embed_dim
        # torch.nn.Embedding default init: N(0, 1)
        key = jax.random.PRNGKey(seed)
        self.embedding_weight = jax.random.normal(
            key, (vocab_size, word_embed_dim), dtype=jnp.float32)

    def __call__(self, input_list):
        if isinstance(input_list, list) and isinstance(input_list[0], str):
            input_list = [self.vocab.encode_text(t) for t in input_list]
        assert isinstance(input_list, list)
        assert isinstance(input_list[0], list)
        assert isinstance(input_list[0][0], int)
        return self.forward_encoded_texts(input_list)

    def forward_encoded_texts(self, texts):
        lengths = np.array([len(tt) for tt in texts], dtype=np.int32)
        max_len = int(np.max(lengths))
        batch = len(texts)

        # Pad with 0 (== <UNK>), exactly like the torch.zeros(...).long() buffer.
        itexts = np.zeros((batch, max_len), dtype=np.int32)
        for ii in range(batch):
            itexts[ii, :lengths[ii]] = np.asarray(texts[ii], dtype=np.int32)

        flat_ids = jnp.asarray(itexts.reshape(-1), dtype=jnp.int32)      # (B*L,)
        gathered = embedding_gather(self.embedding_weight, flat_ids)     # (B*L, D)
        etexts = gathered.reshape(batch, max_len, self.word_embed_dim)   # (B, L, D)

        # text_mask (glue): 1 where position < length, else 0.
        pos = jnp.arange(max_len, dtype=jnp.int32)[None, :]
        text_mask = (pos < jnp.asarray(lengths)[:, None]).astype(jnp.int32)
        # TODO(synk): torch returns int64 mask; int32 used here (TPU-friendly).
        return etexts, text_mask


# ----------------------------- demo / check -----------------------------
if __name__ == "__main__":
    texts_for_vocab = [
        "a cat sat on the mat",
        "dogs run fast in the park",
        "the quick brown fox jumps over the lazy dog",
    ]
    model = EmbeddingModelPallas(texts_for_vocab, word_embed_dim=128, seed=0)

    queries = [
        "the cat jumps over the dog",
        "dogs run",
        "a lazy fox on the mat",
    ]
    etexts, mask = model(queries)
    etexts = jax.block_until_ready(etexts)
    mask = jax.block_until_ready(mask)

    # Reference check: plain jnp.take gather must match the Pallas gather.
    ids = np.zeros((len(queries), mask.shape[1]), dtype=np.int32)
    enc = [model.vocab.encode_text(t) for t in queries]
    for ii, e in enumerate(enc):
        ids[ii, :len(e)] = e
    ref = jnp.take(model.embedding_weight, jnp.asarray(ids).reshape(-1), axis=0)
    ref = ref.reshape(etexts.shape)
    assert etexts.shape == (len(queries), mask.shape[1], 128)
    assert mask.shape == (len(queries), mask.shape[1])
    np.testing.assert_allclose(np.asarray(etexts), np.asarray(ref), rtol=0, atol=0)

    ref_mask = (np.arange(mask.shape[1])[None, :] <
                np.array([len(e) for e in enc])[:, None]).astype(np.int32)
    np.testing.assert_array_equal(np.asarray(mask), ref_mask)

    print("KERNEL_OK")
</pallas_src>

<mosaic_0001>
module attributes {stable_mosaic.version = 11 : i64} {
  func.func @kernel(%arg0: i32, %arg1: memref<128xi32, #tpu.memory_space<smem>>, %arg2: memref<19x128xf32, #tpu.memory_space<vmem>>, %arg3: memref<128x128xf32, #tpu.memory_space<vmem>>) attributes {dimension_semantics = [#tpu.dimension_semantics<parallel>], iteration_bounds = array<i64: 1>, scalar_prefetch = 1 : i64, scratch_operands = 0 : i64, tpu.core_type = #tpu.core_type<tc>, window_params = [{pipeline_mode = #tpu.pipeline_mode<synchronous>, transform_indices = @transform_0, window_bounds = array<i64: 19, 128>}, {transform_indices = @transform_1, window_bounds = array<i64: 128, 128>}]} {
    %c128_i32 = arith.constant 128 : i32
    %0 = arith.muli %arg0, %c128_i32 : i32
    %c0_i32 = arith.constant 0 : i32
    %c128_i32_0 = arith.constant 128 : i32
    %1 = arith.addi %c0_i32, %c128_i32_0 : i32
    %c1_i32 = arith.constant 1 : i32
    scf.for %arg4 = %c0_i32 to %1 step %c1_i32  : i32 {
      %c1_i32_2 = arith.constant 1 : i32
      %2 = arith.muli %arg4, %c1_i32_2 : i32
      %c0_i32_3 = arith.constant 0 : i32
      %3 = arith.addi %c0_i32_3, %2 : i32
      %4 = arith.addi %0, %3 : i32
      %5 = arith.index_cast %4 : i32 to index
      %6 = memref.load %arg1[%5] : memref<128xi32, #tpu.memory_space<smem>>
      %7 = arith.index_cast %6 : i32 to index
      %c0 = arith.constant 0 : index
      %8 = vector.load %arg2[%7, %c0] : memref<19x128xf32, #tpu.memory_space<vmem>>, vector<1x128xf32>
      %9 = arith.index_cast %3 : i32 to index
      %c0_4 = arith.constant 0 : index
      %10 = vector.load %arg3[%9, %c0_4] : memref<128x128xf32, #tpu.memory_space<vmem>>, vector<1x128xf32>
      tpu.vector_store %arg3[%9, %c0_4], %8 {strides = array<i32>} : memref<128x128xf32, #tpu.memory_space<vmem>>, vector<1x128xf32>,
    }
    %c128_i32_1 = arith.constant 128 : i32
    return
  }
  func.func @transform_0(%arg0: i32, %arg1: memref<128xi32, #tpu.memory_space<smem>>) -> (i32, i32) {
    %c0_i32 = arith.constant 0 : i32
    %c0_i32_0 = arith.constant 0 : i32
    %c0_i32_1 = arith.constant 0 : i32
    return %c0_i32, %c0_i32_0 : i32, i32
  }
  func.func @transform_1(%arg0: i32, %arg1: memref<128xi32, #tpu.memory_space<smem>>) -> (i32, i32) {
    %c0_i32 = arith.constant 0 : i32
    %c0_i32_0 = arith.constant 0 : i32
    return %arg0, %c0_i32 : i32, i32
  }
}

</mosaic_0001>

<llo_original>
// kernel: tpu_custom_call.1
$region0: #{tpu_custom_call.1}
  #allocation0 [shape = 'u32[]', space=smem, size = 0x4, offset = 0x4, fixed_abs, tag = 'smem constant byte address 0x4 - core index']
  #allocation1 [shape = 'u32[144,128]{1,0:T(1,128)}', space=vmem, size = 0x12000, scoped, tag = 'internal scratch']
  #allocation2 [shape = 's32[1]{0}', space=sflag, size = 0x4, scoped, tag = 'scoped memory for tpu_custom_call.1']
  #allocation3 [shape = 'u8[512]{0}', space=smem, size = 0x200, scoped, tag = 'prefetched SMEM operand 0']
  %s0 = inlined_call_operand.hbm [shape: s32[128], index: 0, kind: input, shape index: {}]
  %s1 = inlined_call_operand.hbm [shape: f32[19,128], index: 1, kind: input, shape index: {}]
  %s2 = inlined_call_operand.hbm [shape: f32[128,128], index: 2, kind: output, shape index: {}]
  %s3 = sld [smem:[#allocation0]]
  $region25: #{tpu_custom_call.1} parent=0
    _
  %s5 = ssub.s32 1, %s3
  %s6 = scalar_select 0, %s5, %s3
  %8 = dma.hbm_to_smem %s0, 16, [#allocation3], [#allocation2]
  %9 = dma.done [#allocation2], 16
  %10 = sfence
  $region1: #{tpu_custom_call.1} parent=0
    #allocation4 [shape = 'u8[12288]{0}', space=vmem, size = 0x3000, scoped, tag = 'input window, operand 1, single buffered']
    #allocation5 [shape = 's32[1]{0}', space=sflag, size = 0x4, scoped, tag = 'scoped memory for tpu_custom_call.1']
    #allocation6 [shape = 's32[1]{0}', space=sflag, size = 0x4, scoped, tag = 'scoped memory for tpu_custom_call.1']
    #allocation7 [shape = 'u8[65536]{0}', space=vmem, size = 0x10000, scoped, tag = 'output window, operand 0, single buffered']
    %11 = vsyncpa [#allocation5], 0
    %12 = vsyncpa [#allocation6], 0
    // Predicated region
    $region2: #{tpu_custom_call.1} parent=1 // pred_check
      _
    $region3: #{tpu_custom_call.1} parent=1 // pred_check_branch
      %14 = sbr.rel (0) target = $region5
    $region4: #{tpu_custom_call.1} parent=1 // pred_region
      %s16 = ssub.s32 384, 384
      %17 = vsyncadd [#allocation5], %s16
      %s18 = sshll.u32 [#allocation4], 4
      %s19 = int_to_ptr.vmem [resolvable:$true] %s18
      %24 = dma.hbm_to_vmem [thread:$0]  %s1, 384, %s19, [#allocation5], 128, 128, 8
    $region5: #{tpu_custom_call.1} parent=1 // pred_fallthru
      _
    // Predicated region
    $region6: #{tpu_custom_call.1} parent=1 // pred_check
      _
    $region7: #{tpu_custom_call.1} parent=1 // pred_check_branch
      %26 = sbr.rel (0) target = $region9
    $region8: #{tpu_custom_call.1} parent=1 // pred_region
      %27 = dma.done [#allocation5], 384
    $region9: #{tpu_custom_call.1} parent=1 // pred_fallthru
      _
    %s28 = smul.u32 0, 128
    loop: start=0, step=1, limit=128
    $region10: #{tpu_custom_call.1} parent=1 // loop_pre_header
      _
    $region11: #{tpu_custom_call.1} parent=1 // loop_header
      %s30 = sphi 0, %s34
      %p31 = scmp.ge.s32.totalorder %s30, 128
    $region12: #{tpu_custom_call.1} parent=1 // loop_header_branch
      %33 = sbr.rel (%p31) target = $region16
    $region13: #{tpu_custom_call.1} parent=1 // loop_body
      %s35 = sadd.s32 %s28, %s30
      %s36 = sld [smem:[#allocation3 + %s35]]
      %s37 = scalar_lea.vmem [#allocation4], %s36
      %v38 = vld [vmem:[%s37] sm:$0x1]
      %s39 = scalar_lea.vmem [#allocation7], %s30
      %40 = vst [vmem:[%s39] sm:$0x1] %v38
    $region14: #{tpu_custom_call.1} parent=1 // loop_footer
      %s34 = sadd.s32 1, %s30
    $region15: #{tpu_custom_call.1} parent=1 // loop_footer_branch
      %29 = sbr.rel target = $region11
    $region16: #{tpu_custom_call.1} parent=1 // loop_exit
      _
    // Predicated region
    $region17: #{tpu_custom_call.1} parent=1 // pred_check
      _
    $region18: #{tpu_custom_call.1} parent=1 // pred_check_branch
      %42 = sbr.rel (0) target = $region20
    $region19: #{tpu_custom_call.1} parent=1 // pred_region
      %s44 = ssub.s32 2048, 2048
      %45 = vsyncadd [#allocation6], %s44
      %s46 = sshll.u32 [#allocation7], 4
      %s47 = int_to_ptr.vmem [resolvable:$true] %s46
      %52 = dma.vmem_to_hbm [thread:$0]  %s47, 2048, %s2, [#allocation6], 128, 128, 8
    $region20: #{tpu_custom_call.1} parent=1 // pred_fallthru
      _
    // Predicated region
    $region21: #{tpu_custom_call.1} parent=1 // pred_check
      _
    $region22: #{tpu_custom_call.1} parent=1 // pred_check_branch
      %54 = sbr.rel (0) target = $region24
    $region23: #{tpu_custom_call.1} parent=1 // pred_region
      %55 = dma.done [#allocation6], 2048
    $region24: #{tpu_custom_call.1} parent=1 // pred_fallthru
      _
    %56 = vsyncpa [#allocation5], 1
    %57 = vsyncpa [#allocation6], 1

</llo_original>
